<compile_context>
chip_gen: v5e
topology: v5e:2x2
jax: 0.10.0
libtpu: 0.0.40
codegen_flags: <defaults>
</compile_context>

<pallas_src>
import functools

import jax
import jax.numpy as jnp
from jax import lax
from jax.experimental import pallas as pl
from jax.experimental.pallas import tpu as pltpu


def _p6_conv_kernel(x_ref, w_ref, b_ref, o_ref, *, Ho, Wo, Cin2, Cout):
    """Stride-2 3x3 conv for one batch element.

    x_ref : (Ho+1, 2, Wo+1, 2*Cin)  padded input, rows/cols folded even/odd
    w_ref : (6, 2*Cin, Cout)        per-(dh, col-pair) weight blocks
    b_ref : (1, Cout)               bias
    o_ref : (Ho*Wo, Cout)           output for this batch element
    """
    acc = jnp.zeros((Ho * Wo, Cout), jnp.float32)
    t = 0
    for dh in range(3):
        hq, hr = dh // 2, dh % 2          # padded row 2j+dh == (j+hq, hr)
        for wq in range(2):               # col-pair shift: 0 -> dw=0,1 ; 1 -> dw=2
            tap = x_ref[pl.ds(hq, Ho), pl.ds(hr, 1), pl.ds(wq, Wo), :]
            tap = tap.reshape(Ho * Wo, Cin2)
            acc = acc + jnp.dot(tap, w_ref[t],
                                preferred_element_type=jnp.float32)
            t += 1
    o_ref[...] = (acc + b_ref[...].astype(jnp.float32)).astype(o_ref.dtype)


def last_level_p6(x_nchw, weight_oihw, bias):
    """Forward of LastLevelP6. Returns [p6] with p6 in NCHW, matching the module."""
    N, Cin, H, W = x_nchw.shape
    Cout = weight_oihw.shape[0]
    Ho = (H + 2 - 3) // 2 + 1
    Wo = (W + 2 - 3) // 2 + 1
    Hp, Wp = 2 * Ho + 2, 2 * Wo + 2       # even padded extents incl. halo rows/cols

    # --- glue (single fused HBM pass): layout + zero pad + free even/odd fold ---
    x = jnp.transpose(x_nchw, (0, 2, 3, 1))                           # NHWC
    x = jnp.pad(x, ((0, 0), (1, Hp - H - 1), (1, Wp - W - 1), (0, 0)))
    x = x.reshape(N, Ho + 1, 2, Wo + 1, 2 * Cin)                      # free reshape

    # weights: (Cout, Cin, 3, 3) -> 6 blocks of (2*Cin, Cout); dw folded into K.
    w = jnp.transpose(weight_oihw, (2, 3, 1, 0))                      # (3, 3, Cin, Cout)
    zeros = jnp.zeros((Cin, Cout), w.dtype)
    w_taps = jnp.stack(
        [jnp.concatenate([w[dh, 0], w[dh, 1]], axis=0) if wq == 0
         else jnp.concatenate([w[dh, 2], zeros], axis=0)
         for dh in range(3) for wq in range(2)],
        axis=0)                                                       # (6, 2*Cin, Cout)
    bias2d = bias.reshape(1, Cout)

    kernel = functools.partial(_p6_conv_kernel, Ho=Ho, Wo=Wo,
                               Cin2=2 * Cin, Cout=Cout)

    # TODO(synk): for very large Ho*Wo / Cin on v7x (64 MiB VMEM), add a second
    # grid axis tiling output rows (halo row handled via pl.ANY + manual DMA);
    # unnecessary at FPN res5 sizes.
    out = pl.pallas_call(
        kernel,
        out_shape=jax.ShapeDtypeStruct((N, Ho * Wo, Cout), x_nchw.dtype),
        grid_spec=pltpu.PrefetchScalarGridSpec(
            num_scalar_prefetch=0,
            grid=(N,),
            in_specs=[
                pl.BlockSpec((None, Ho + 1, 2, Wo + 1, 2 * Cin),
                             lambda n: (n, 0, 0, 0, 0)),
                pl.BlockSpec((6, 2 * Cin, Cout), lambda n: (0, 0, 0)),
                pl.BlockSpec((1, Cout), lambda n: (0, 0)),
            ],
            out_specs=pl.BlockSpec((None, Ho * Wo, Cout), lambda n: (n, 0, 0)),
        ),
        compiler_params=pltpu.CompilerParams(
            dimension_semantics=("parallel",),
        ),
    )(x, w_taps, bias2d)

    p6 = jnp.transpose(out.reshape(N, Ho, Wo, Cout), (0, 3, 1, 2))    # back to NCHW
    return [p6]


def _reference_conv(x_nchw, weight_oihw, bias):
    y = lax.conv_general_dilated(
        x_nchw, weight_oihw,
        window_strides=(2, 2), padding=((1, 1), (1, 1)),
        dimension_numbers=("NCHW", "OIHW", "NCHW"),
    )
    return y + bias.reshape(1, -1, 1, 1)


if __name__ == "__main__":
    key = jax.random.PRNGKey(0)
    k_x, k_w = jax.random.split(key)

    N, Cin, H, W = 2, 4, 16, 16
    Cout = 8

    x = jax.random.normal(k_x, (N, Cin, H, W), dtype=jnp.float32)

    # Deterministic parameter init (c2_xavier_fill ~ kaiming_uniform(a=1), bias=0).
    fan_in = Cin * 3 * 3
    bound = (6.0 / (2.0 * fan_in)) ** 0.5
    weight = jax.random.uniform(k_w, (Cout, Cin, 3, 3), jnp.float32, -bound, bound)
    bias = jnp.zeros((Cout,), jnp.float32)

    (p6,) = last_level_p6(x, weight, bias)
    p6 = jax.block_until_ready(p6)

    ref = _reference_conv(x, weight, bias)
    assert p6.shape == (N, Cout, H // 2, W // 2), p6.shape
    assert jnp.allclose(p6, ref, atol=1e-5, rtol=1e-5), float(jnp.abs(p6 - ref).max())

    print("KERNEL_OK")
</pallas_src>

<mosaic_0001>
module attributes {stable_mosaic.version = 11 : i64} {
  func.func @_p6_conv_kernel(%arg0: i32, %arg1: memref<1x9x2x9x8xf32, #tpu.memory_space<vmem>>, %arg2: memref<6x8x8xf32, #tpu.memory_space<vmem>>, %arg3: memref<1x8xf32, #tpu.memory_space<vmem>>, %arg4: memref<1x64x8xf32, #tpu.memory_space<vmem>>) attributes {dimension_semantics = [#tpu.dimension_semantics<parallel>], iteration_bounds = array<i64: 2>, scalar_prefetch = 0 : i64, scratch_operands = 0 : i64, tpu.core_type = #tpu.core_type<tc>, window_params = [{transform_indices = @transform_0, window_bounds = array<i64: 1, 9, 2, 9, 8>}, {pipeline_mode = #tpu.pipeline_mode<synchronous>, transform_indices = @transform_1, window_bounds = array<i64: 6, 8, 8>}, {pipeline_mode = #tpu.pipeline_mode<synchronous>, transform_indices = @transform_2, window_bounds = array<i64: 1, 8>}, {transform_indices = @transform_3, window_bounds = array<i64: 1, 64, 8>}]} {
    %cst = arith.constant 0.000000e+00 : f32
    %0 = vector.broadcast %cst : f32 to vector<64x8xf32>
    %c0 = arith.constant 0 : index
    %c0_0 = arith.constant 0 : index
    %c0_1 = arith.constant 0 : index
    %c0_2 = arith.constant 0 : index
    %c0_3 = arith.constant 0 : index
    %1 = vector.load %arg1[%c0, %c0_0, %c0_1, %c0_2, %c0_3] : memref<1x9x2x9x8xf32, #tpu.memory_space<vmem>>, vector<1x8x1x8x8xf32>
    %2 = vector.shape_cast %1 : vector<1x8x1x8x8xf32> to vector<8x1x8x8xf32>
    %3 = vector.shape_cast %2 : vector<8x1x8x8xf32> to vector<64x8xf32>
    %c0_4 = arith.constant 0 : index
    %c0_5 = arith.constant 0 : index
    %c0_6 = arith.constant 0 : index
    %4 = vector.load %arg2[%c0_4, %c0_5, %c0_6] : memref<6x8x8xf32, #tpu.memory_space<vmem>>, vector<1x8x8xf32>
    %5 = vector.shape_cast %4 : vector<1x8x8xf32> to vector<8x8xf32>
    %cst_7 = arith.constant dense<0.000000e+00> : vector<64x8xf32>
    %6 = tpu.matmul %3, %5, %cst_7 {dimension_numbers = #tpu.dot_dimension_numbers<[1], [0], [0], [1], [0, 0, 1, 1], [], []>} : vector<64x8xf32>, vector<8x8xf32>, vector<64x8xf32> -> vector<64x8xf32>
    %7 = arith.addf %0, %6 : vector<64x8xf32>
    %c0_8 = arith.constant 0 : index
    %c0_9 = arith.constant 0 : index
    %c0_10 = arith.constant 0 : index
    %c1 = arith.constant 1 : index
    %c0_11 = arith.constant 0 : index
    %8 = vector.load %arg1[%c0_8, %c0_9, %c0_10, %c1, %c0_11] : memref<1x9x2x9x8xf32, #tpu.memory_space<vmem>>, vector<1x8x1x8x8xf32>
    %9 = vector.shape_cast %8 : vector<1x8x1x8x8xf32> to vector<8x1x8x8xf32>
    %10 = vector.shape_cast %9 : vector<8x1x8x8xf32> to vector<64x8xf32>
    %c1_12 = arith.constant 1 : index
    %c0_13 = arith.constant 0 : index
    %c0_14 = arith.constant 0 : index
    %11 = vector.load %arg2[%c1_12, %c0_13, %c0_14] : memref<6x8x8xf32, #tpu.memory_space<vmem>>, vector<1x8x8xf32>
    %12 = vector.shape_cast %11 : vector<1x8x8xf32> to vector<8x8xf32>
    %cst_15 = arith.constant dense<0.000000e+00> : vector<64x8xf32>
    %13 = tpu.matmul %10, %12, %cst_15 {dimension_numbers = #tpu.dot_dimension_numbers<[1], [0], [0], [1], [0, 0, 1, 1], [], []>} : vector<64x8xf32>, vector<8x8xf32>, vector<64x8xf32> -> vector<64x8xf32>
    %14 = arith.addf %7, %13 : vector<64x8xf32>
    %c0_16 = arith.constant 0 : index
    %c0_17 = arith.constant 0 : index
    %c1_18 = arith.constant 1 : index
    %c0_19 = arith.constant 0 : index
    %c0_20 = arith.constant 0 : index
    %15 = vector.load %arg1[%c0_16, %c0_17, %c1_18, %c0_19, %c0_20] : memref<1x9x2x9x8xf32, #tpu.memory_space<vmem>>, vector<1x8x1x8x8xf32>
    %16 = vector.shape_cast %15 : vector<1x8x1x8x8xf32> to vector<8x1x8x8xf32>
    %17 = vector.shape_cast %16 : vector<8x1x8x8xf32> to vector<64x8xf32>
    %c2 = arith.constant 2 : index
    %c0_21 = arith.constant 0 : index
    %c0_22 = arith.constant 0 : index
    %18 = vector.load %arg2[%c2, %c0_21, %c0_22] : memref<6x8x8xf32, #tpu.memory_space<vmem>>, vector<1x8x8xf32>
    %19 = vector.shape_cast %18 : vector<1x8x8xf32> to vector<8x8xf32>
    %cst_23 = arith.constant dense<0.000000e+00> : vector<64x8xf32>
    %20 = tpu.matmul %17, %19, %cst_23 {dimension_numbers = #tpu.dot_dimension_numbers<[1], [0], [0], [1], [0, 0, 1, 1], [], []>} : vector<64x8xf32>, vector<8x8xf32>, vector<64x8xf32> -> vector<64x8xf32>
    %21 = arith.addf %14, %20 : vector<64x8xf32>
    %c0_24 = arith.constant 0 : index
    %c0_25 = arith.constant 0 : index
    %c1_26 = arith.constant 1 : index
    %c1_27 = arith.constant 1 : index
    %c0_28 = arith.constant 0 : index
    %22 = vector.load %arg1[%c0_24, %c0_25, %c1_26, %c1_27, %c0_28] : memref<1x9x2x9x8xf32, #tpu.memory_space<vmem>>, vector<1x8x1x8x8xf32>
    %23 = vector.shape_cast %22 : vector<1x8x1x8x8xf32> to vector<8x1x8x8xf32>
    %24 = vector.shape_cast %23 : vector<8x1x8x8xf32> to vector<64x8xf32>
    %c3 = arith.constant 3 : index
    %c0_29 = arith.constant 0 : index
    %c0_30 = arith.constant 0 : index
    %25 = vector.load %arg2[%c3, %c0_29, %c0_30] : memref<6x8x8xf32, #tpu.memory_space<vmem>>, vector<1x8x8xf32>
    %26 = vector.shape_cast %25 : vector<1x8x8xf32> to vector<8x8xf32>
    %cst_31 = arith.constant dense<0.000000e+00> : vector<64x8xf32>
    %27 = tpu.matmul %24, %26, %cst_31 {dimension_numbers = #tpu.dot_dimension_numbers<[1], [0], [0], [1], [0, 0, 1, 1], [], []>} : vector<64x8xf32>, vector<8x8xf32>, vector<64x8xf32> -> vector<64x8xf32>
    %28 = arith.addf %21, %27 : vector<64x8xf32>
    %c0_32 = arith.constant 0 : index
    %c1_33 = arith.constant 1 : index
    %c0_34 = arith.constant 0 : index
    %c0_35 = arith.constant 0 : index
    %c0_36 = arith.constant 0 : index
    %29 = vector.load %arg1[%c0_32, %c1_33, %c0_34, %c0_35, %c0_36] : memref<1x9x2x9x8xf32, #tpu.memory_space<vmem>>, vector<1x8x1x8x8xf32>
    %30 = vector.shape_cast %29 : vector<1x8x1x8x8xf32> to vector<8x1x8x8xf32>
    %31 = vector.shape_cast %30 : vector<8x1x8x8xf32> to vector<64x8xf32>
    %c4 = arith.constant 4 : index
    %c0_37 = arith.constant 0 : index
    %c0_38 = arith.constant 0 : index
    %32 = vector.load %arg2[%c4, %c0_37, %c0_38] : memref<6x8x8xf32, #tpu.memory_space<vmem>>, vector<1x8x8xf32>
    %33 = vector.shape_cast %32 : vector<1x8x8xf32> to vector<8x8xf32>
    %cst_39 = arith.constant dense<0.000000e+00> : vector<64x8xf32>
    %34 = tpu.matmul %31, %33, %cst_39 {dimension_numbers = #tpu.dot_dimension_numbers<[1], [0], [0], [1], [0, 0, 1, 1], [], []>} : vector<64x8xf32>, vector<8x8xf32>, vector<64x8xf32> -> vector<64x8xf32>
    %35 = arith.addf %28, %34 : vector<64x8xf32>
    %c0_40 = arith.constant 0 : index
    %c1_41 = arith.constant 1 : index
    %c0_42 = arith.constant 0 : index
    %c1_43 = arith.constant 1 : index
    %c0_44 = arith.constant 0 : index
    %36 = vector.load %arg1[%c0_40, %c1_41, %c0_42, %c1_43, %c0_44] : memref<1x9x2x9x8xf32, #tpu.memory_space<vmem>>, vector<1x8x1x8x8xf32>
    %37 = vector.shape_cast %36 : vector<1x8x1x8x8xf32> to vector<8x1x8x8xf32>
    %38 = vector.shape_cast %37 : vector<8x1x8x8xf32> to vector<64x8xf32>
    %c5 = arith.constant 5 : index
    %c0_45 = arith.constant 0 : index
    %c0_46 = arith.constant 0 : index
    %39 = vector.load %arg2[%c5, %c0_45, %c0_46] : memref<6x8x8xf32, #tpu.memory_space<vmem>>, vector<1x8x8xf32>
    %40 = vector.shape_cast %39 : vector<1x8x8xf32> to vector<8x8xf32>
    %cst_47 = arith.constant dense<0.000000e+00> : vector<64x8xf32>
    %41 = tpu.matmul %38, %40, %cst_47 {dimension_numbers = #tpu.dot_dimension_numbers<[1], [0], [0], [1], [0, 0, 1, 1], [], []>} : vector<64x8xf32>, vector<8x8xf32>, vector<64x8xf32> -> vector<64x8xf32>
    %42 = arith.addf %35, %41 : vector<64x8xf32>
    %c0_48 = arith.constant 0 : index
    %c0_49 = arith.constant 0 : index
    %43 = vector.load %arg3[%c0_48, %c0_49] : memref<1x8xf32, #tpu.memory_space<vmem>>, vector<1x8xf32>
    %44 = vector.broadcast %43 : vector<1x8xf32> to vector<64x8xf32>
    %45 = arith.addf %42, %44 : vector<64x8xf32>
    %c0_50 = arith.constant 0 : index
    %c0_51 = arith.constant 0 : index
    %c0_52 = arith.constant 0 : index
    %46 = vector.load %arg4[%c0_50, %c0_51, %c0_52] : memref<1x64x8xf32, #tpu.memory_space<vmem>>, vector<1x64x8xf32>
    %47 = vector.shape_cast %46 : vector<1x64x8xf32> to vector<64x8xf32>
    %48 = vector.shape_cast %45 : vector<64x8xf32> to vector<1x64x8xf32>
    tpu.vector_store %arg4[%c0_50, %c0_51, %c0_52], %48 {strides = array<i32>} : memref<1x64x8xf32, #tpu.memory_space<vmem>>, vector<1x64x8xf32>,
    return
  }
  func.func @transform_0(%arg0: i32) -> (i32, i32, i32, i32, i32) {
    %c0_i32 = arith.constant 0 : i32
    %c0_i32_0 = arith.constant 0 : i32
    %c0_i32_1 = arith.constant 0 : i32
    %c0_i32_2 = arith.constant 0 : i32
    %c0_i32_3 = arith.constant 0 : i32
    return %arg0, %c0_i32, %c0_i32_0, %c0_i32_1, %c0_i32_2 : i32, i32, i32, i32, i32
  }
  func.func @transform_1(%arg0: i32) -> (i32, i32, i32) {
    %c0_i32 = arith.constant 0 : i32
    %c0_i32_0 = arith.constant 0 : i32
    %c0_i32_1 = arith.constant 0 : i32
    %c0_i32_2 = arith.constant 0 : i32
    return %c0_i32, %c0_i32_0, %c0_i32_1 : i32, i32, i32
  }
  func.func @transform_2(%arg0: i32) -> (i32, i32) {
    %c0_i32 = arith.constant 0 : i32
    %c0_i32_0 = arith.constant 0 : i32
    %c0_i32_1 = arith.constant 0 : i32
    return %c0_i32, %c0_i32_0 : i32, i32
  }
  func.func @transform_3(%arg0: i32) -> (i32, i32, i32) {
    %c0_i32 = arith.constant 0 : i32
    %c0_i32_0 = arith.constant 0 : i32
    %c0_i32_1 = arith.constant 0 : i32
    return %arg0, %c0_i32, %c0_i32_0 : i32, i32, i32
  }
}

</mosaic_0001>

<llo_original>
// kernel: tpu_custom_call.1
$region0: #{tpu_custom_call.1}
  #allocation0 [shape = 'u32[]', space=smem, size = 0x4, offset = 0x4, fixed_abs, tag = 'smem constant byte address 0x4 - core index']
  #allocation1 [shape = 'u32[72,128]{1,0:T(1,128)}', space=vmem, size = 0x9000, scoped, tag = 'internal scratch']
  %s0 = inlined_call_operand.vmem [shape: f32[2,9,2,9,8], index: 0, kind: input, shape index: {}]
  %s1 = inlined_call_operand.vmem [shape: f32[6,8,8], index: 1, kind: input, shape index: {}]
  %s2 = inlined_call_operand.vmem [shape: f32[1,8], index: 2, kind: input, shape index: {}]
  %s3 = inlined_call_operand.vmem [shape: f32[2,64,8], index: 3, kind: output, shape index: {}]
  %s4 = sld [smem:[#allocation0]]
  $region45: #{tpu_custom_call.1} parent=0
    _
  %s6 = ssub.s32 1, %s4
  %s7 = scalar_select 0, %s6, %s4
  loop: start=0, step=1, limit=4
  $region2: #{tpu_custom_call.1} parent=0 // loop_pre_header
    _
  $region3: #{tpu_custom_call.1} parent=0 // loop_header
    %s9 = sphi 0, %s13
    %p10 = scmp.ge.s32.totalorder %s9, 4
    %s19 = sphi 0, %s21
    %s22 = sphi 0, %s19
    %s23 = sphi 0, %s22
    %s39 = sphi 0, %s23
    %s43 = sphi 0, %s43
    %s45 = sphi 0, %s43
    %s46 = sphi 0, %s45
    %s60 = sphi 0, %s46
    %s64 = sphi 0, %s64
    %s66 = sphi 0, %s64
    %s67 = sphi 0, %s66
    %s81 = sphi 0, %s67
    %s87 = sphi 0, %s89
    %s90 = sphi 0, %s87
    %s91 = sphi 0, %s90
    %s107 = sphi 0, %s91
  $region4: #{tpu_custom_call.1} parent=0 // loop_header_branch
    %12 = sbr.rel (%p10) target = $region8
  $region5: #{tpu_custom_call.1} parent=0 // loop_body
    %s14 = ssub.s32 %s9, 1
    %s15 = ssub.s32 %s9, 2
    %s16 = sadd.s32 %s9, 1
    %s17 = ssub.s32 %s9, %s16
    %p18 = scmp.eq.s32.totalorder %s17, 0
    %s20 = sadd.s32 %s19, 1
    %s21 = scalar_select %p18, %s19, %s20
    %p24 = pneg %p18
    %p25 = scmp.eq.s32.totalorder %s9, 1
    %p26 = por %p24, %p25
    %p27 = scmp.ne.s32.totalorder %s19, %s22
    %p28 = scmp.eq.s32.totalorder %s9, 0
    %p29 = por %p27, %p28
    %p30 = scmp.ne.s32.totalorder %s19, %s22
    %p31 = scmp.eq.s32.totalorder %s14, 1
    %p32 = por %p30, %p31
    %p33 = scmp.ne.s32.totalorder %s22, %s23
    %p34 = scmp.eq.s32.totalorder %s14, 0
    %p35 = por %p33, %p34
    %p36 = scmp.ne.s32.totalorder %s22, %s23
    %p37 = scmp.eq.s32.totalorder %s15, 1
    %p38 = por %p36, %p37
    %p40 = scmp.ne.s32.totalorder %s23, %s39
    %p41 = scmp.eq.s32.totalorder %s15, 0
    %p42 = por %p40, %p41
    %s44 = sadd.s32 %s43, 1
    %p47 = scmp.eq.s32.totalorder %s9, 1
    %p48 = scmp.ne.s32.totalorder %s43, %s45
    %p49 = scmp.eq.s32.totalorder %s9, 0
    %p50 = por %p48, %p49
    %p51 = scmp.ne.s32.totalorder %s43, %s45
    %p52 = scmp.eq.s32.totalorder %s14, 1
    %p53 = por %p51, %p52
    %p54 = scmp.ne.s32.totalorder %s45, %s46
    %p55 = scmp.eq.s32.totalorder %s14, 0
    %p56 = por %p54, %p55
    %p57 = scmp.ne.s32.totalorder %s45, %s46
    %p58 = scmp.eq.s32.totalorder %s15, 1
    %p59 = por %p57, %p58
    %p61 = scmp.ne.s32.totalorder %s46, %s60
    %p62 = scmp.eq.s32.totalorder %s15, 0
    %p63 = por %p61, %p62
    %s65 = sadd.s32 %s64, 1
    %p68 = scmp.eq.s32.totalorder %s9, 1
    %p69 = scmp.ne.s32.totalorder %s64, %s66
    %p70 = scmp.eq.s32.totalorder %s9, 0
    %p71 = por %p69, %p70
    %p72 = scmp.ne.s32.totalorder %s64, %s66
    %p73 = scmp.eq.s32.totalorder %s14, 1
    %p74 = por %p72, %p73
    %p75 = scmp.ne.s32.totalorder %s66, %s67
    %p76 = scmp.eq.s32.totalorder %s14, 0
    %p77 = por %p75, %p76
    %p78 = scmp.ne.s32.totalorder %s66, %s67
    %p79 = scmp.eq.s32.totalorder %s15, 1
    %p80 = por %p78, %p79
    %p82 = scmp.ne.s32.totalorder %s67, %s81
    %p83 = scmp.eq.s32.totalorder %s15, 0
    %p84 = por %p82, %p83
    %s85 = ssub.s32 %s9, %s16
    %p86 = scmp.eq.s32.totalorder %s85, 0
    %s88 = sadd.s32 %s87, 1
    %s89 = scalar_select %p86, %s87, %s88
    %p92 = pneg %p86
    %p93 = scmp.eq.s32.totalorder %s9, 1
    %p94 = por %p92, %p93
    %p95 = scmp.ne.s32.totalorder %s87, %s90
    %p96 = scmp.eq.s32.totalorder %s9, 0
    %p97 = por %p95, %p96
    %p98 = scmp.ne.s32.totalorder %s87, %s90
    %p99 = scmp.eq.s32.totalorder %s14, 1
    %p100 = por %p98, %p99
    %p101 = scmp.ne.s32.totalorder %s90, %s91
    %p102 = scmp.eq.s32.totalorder %s14, 0
    %p103 = por %p101, %p102
    %p104 = scmp.ne.s32.totalorder %s90, %s91
    %p105 = scmp.eq.s32.totalorder %s15, 1
    %p106 = por %p104, %p105
    %p108 = scmp.ne.s32.totalorder %s91, %s107
    %p109 = scmp.eq.s32.totalorder %s15, 0
    %p110 = por %p108, %p109
    %p111 = scmp.le.s32.totalorder 1, %s9
    %p112 = scmp.lt.s32.totalorder %s9, 3
    %p113 = pnand %p111, %p112
    %p114 = pneg %p113
    // Predicated region
    $region9: #{tpu_custom_call.1} parent=5 // pred_check
      _
    $region10: #{tpu_custom_call.1} parent=5 // pred_check_branch
      %116 = sbr.rel (%p113) target = $region12
    $region11: #{tpu_custom_call.1} parent=5 // pred_region
      %s117 = ssub.s32 %s9, 1
      // Predicated region
      $region13: #{tpu_custom_call.1} parent=11 // pred_check
        %p118 = pneg %p56
      $region14: #{tpu_custom_call.1} parent=11 // pred_check_branch
        %120 = sbr.rel (%p118) target = $region16
      $region15: #{tpu_custom_call.1} parent=11 // pred_region
        _
      $region16: #{tpu_custom_call.1} parent=11 // pred_fallthru
        _
      // Predicated region
      $region17: #{tpu_custom_call.1} parent=11 // pred_check
        %p121 = pneg %p77
      $region18: #{tpu_custom_call.1} parent=11 // pred_check_branch
        %123 = sbr.rel (%p121) target = $region20
      $region19: #{tpu_custom_call.1} parent=11 // pred_region
        _
      $region20: #{tpu_custom_call.1} parent=11 // pred_fallthru
        _
    $region12: #{tpu_custom_call.1} parent=5 // pred_fallthru
      _
    %p124 = scmp.lt.s32.totalorder %s9, 2
    // Predicated region
    $region21: #{tpu_custom_call.1} parent=5 // pred_check
      %p125 = pneg %p124
    $region22: #{tpu_custom_call.1} parent=5 // pred_check_branch
      %127 = sbr.rel (%p125) target = $region24
    $region23: #{tpu_custom_call.1} parent=5 // pred_region
      // Predicated region
      $region25: #{tpu_custom_call.1} parent=23 // pred_check
        %p128 = pneg %p29
      $region26: #{tpu_custom_call.1} parent=23 // pred_check_branch
        %130 = sbr.rel (%p128) target = $region28
      $region27: #{tpu_custom_call.1} parent=23 // pred_region
        %p131 = scmp.lt.s32.totalorder %s9, 1
        %s132 = scalar_select %p131, %s9, 1
        %s133 = smul.addr %s132, 36
        %s134 = smul.addr %s133, 8
        %s135 = scalar_lea.vmem %s0, %s134
      $region28: #{tpu_custom_call.1} parent=23 // pred_fallthru
        _
    $region24: #{tpu_custom_call.1} parent=5 // pred_fallthru
      _
    %p136 = scmp.le.s32.totalorder 1, %s9
    %p137 = scmp.lt.s32.totalorder %s9, 3
    %p138 = pnand %p136, %p137
    %p139 = pneg %p138
    // Predicated region
    $region29: #{tpu_custom_call.1} parent=5 // pred_check
      _
    $region30: #{tpu_custom_call.1} parent=5 // pred_check_branch
      %141 = sbr.rel (%p138) target = $region32
    $region31: #{tpu_custom_call.1} parent=5 // pred_region
      %s142 = ssub.s32 %s9, 1
      %p143 = scmp.lt.s32.totalorder %s14, 1
      %s144 = scalar_select %p143, %s14, 1
      %s145 = smul.addr %s144, 36
      %s146 = smul.addr %s145, 8
      %s147 = scalar_lea.vmem %s0, %s146
      %p148 = pneg %p35
      %p149 = pneg %p32
      %p150 = pneg %p56
      %p151 = pneg %p53
      %p152 = pneg %p77
      %p153 = pneg %p74
      %p154 = pneg %p103
      %p155 = pneg %p100
      %p156 = scmp.lt.s32.totalorder %s14, 1
      %s157 = scalar_select %p156, %s14, 1
      %s158 = smul.addr %s157, 8
      %s159 = smul.addr %s158, 8
      %s160 = scalar_lea.vmem %s3, %s159
      %p161 = scmp.lt.s32.totalorder %s14, 1
      %s162 = scalar_select %p161, %s14, 1
      %s163 = smul.addr %s162, 36
      %s164 = smul.addr %s163, 8
      %s165 = scalar_lea.vmem %s0, %s164
      %p166 = scmp.lt.s32.totalorder %s14, 1
      %s167 = scalar_select %p166, %s14, 1
      %s168 = smul.addr %s167, 8
      %s169 = smul.addr %s168, 8
      %s170 = scalar_lea.vmem %s3, %s169
      %v171 = vld [vmem:[%s165] sm:$0xff]
      %v172 = vld [vmem:[%s165 + $0x20] sm:$0xff]
      %v173 = vld [vmem:[%s165 + $0x40] sm:$0xff]
      %v174 = vld [vmem:[%s165 + $0x60] sm:$0xff]
      %v175 = vld [vmem:[%s165 + $0x80] sm:$0xff]
      %v176 = vld [vmem:[%s165 + $0xa0] sm:$0xff]
      %v177 = vld [vmem:[%s165 + $0xc0] sm:$0xff]
      %v178 = vld [vmem:[%s165 + $0xe0] sm:$0xff]
      %v179 = vld [vmem:[%s1] sm:$0xff]
      %v180 = vld [vmem:[%s165 + $0x1] sm:$0xff]
      %v181 = vld [vmem:[%s165 + $0x21] sm:$0xff]
      %v182 = vld [vmem:[%s165 + $0x41] sm:$0xff]
      %v183 = vld [vmem:[%s165 + $0x61] sm:$0xff]
      %v184 = vld [vmem:[%s165 + $0x81] sm:$0xff]
      %v185 = vld [vmem:[%s165 + $0xa1] sm:$0xff]
      %v186 = vld [vmem:[%s165 + $0xc1] sm:$0xff]
      %v187 = vld [vmem:[%s165 + $0xe1] sm:$0xff]
      %s188 = scalar_lea.vmem %s1, 8
      %v189 = vld [vmem:[%s188] sm:$0xff]
      %vm190 = vcmask 64512
      %v192 = vsel %vm190, %v180, 0
      %v195 = vsel %vm190, %v181, 0
      %v198 = vsel %vm190, %v182, 0
      %v201 = vsel %vm190, %v183, 0
      %v204 = vsel %vm190, %v184, 0
      %v207 = vsel %vm190, %v185, 0
      %v210 = vsel %vm190, %v186, 0
      %v213 = vsel %vm190, %v187, 0
      %215 = vmatpush.msra.mxu0 0.0
      %216 = vmatpush.msra.mxu0 0.0
      %217 = vmatpush.msra.mxu0 0.0
      %218 = vmatpush.msra.mxu0 0.0
      %219 = vmatpush.msra.mxu0 0.0
      %220 = vmatpush.msra.mxu0 0.0
      %221 = vmatpush.msra.mxu0 0.0
      %222 = vmatpush.msra.mxu0 0.0
      %223 = vmatpush.msra.mxu0 0.0
      %224 = vmatpush.msra.mxu0 0.0
      %225 = vmatpush.msra.mxu0 0.0
      %226 = vmatpush.msra.mxu0 0.0
      %227 = vmatpush.msra.mxu0 0.0
      %228 = vmatpush.msra.mxu0 0.0
      %229 = vmatpush.msra.mxu0 0.0
      %230 = vmatpush.msra.mxu0 %v189
      %231 = vmatmul.f32.gmra.mxu0 %v192
      %v232 = vpop.f32.mrf.mxu0
      %v233 = vadd.f32 0.0, %v232
      %234 = vmatmul.f32.gmra.mxu0 %v195
      %v235 = vpop.f32.mrf.mxu0
      %v236 = vadd.f32 0.0, %v235
      %237 = vmatmul.f32.gmra.mxu0 %v198
      %v238 = vpop.f32.mrf.mxu0
      %v239 = vadd.f32 0.0, %v238
      %240 = vmatmul.f32.gmra.mxu0 %v201
      %v241 = vpop.f32.mrf.mxu0
      %v242 = vadd.f32 0.0, %v241
      %243 = vmatmul.f32.gmra.mxu0 %v204
      %v244 = vpop.f32.mrf.mxu0
      %v245 = vadd.f32 0.0, %v244
      %246 = vmatmul.f32.gmra.mxu0 %v207
      %v247 = vpop.f32.mrf.mxu0
      %v248 = vadd.f32 0.0, %v247
      %249 = vmatmul.f32.gmra.mxu0 %v210
      %v250 = vpop.f32.mrf.mxu0
      %v251 = vadd.f32 0.0, %v250
      %252 = vmatmul.f32.gmra.mxu0 %v213
      %v253 = vpop.f32.mrf.mxu0
      %v254 = vadd.f32 0.0, %v253
      %255 = vdwg.mxu0
      %v257 = vsel %vm190, %v171, 0
      %v260 = vsel %vm190, %v172, 0
      %v263 = vsel %vm190, %v173, 0
      %v266 = vsel %vm190, %v174, 0
      %v269 = vsel %vm190, %v175, 0
      %v272 = vsel %vm190, %v176, 0
      %v275 = vsel %vm190, %v177, 0
      %v278 = vsel %vm190, %v178, 0
      %280 = vmatpush.msra.mxu0 0.0
      %281 = vmatpush.msra.mxu0 0.0
      %282 = vmatpush.msra.mxu0 0.0
      %283 = vmatpush.msra.mxu0 0.0
      %284 = vmatpush.msra.mxu0 0.0
      %285 = vmatpush.msra.mxu0 0.0
      %286 = vmatpush.msra.mxu0 0.0
      %287 = vmatpush.msra.mxu0 0.0
      %288 = vmatpush.msra.mxu0 0.0
      %289 = vmatpush.msra.mxu0 0.0
      %290 = vmatpush.msra.mxu0 0.0
      %291 = vmatpush.msra.mxu0 0.0
      %292 = vmatpush.msra.mxu0 0.0
      %293 = vmatpush.msra.mxu0 0.0
      %294 = vmatpush.msra.mxu0 0.0
      %295 = vmatpush.msra.mxu0 %v179
      %296 = vmatmul.f32.gmra.mxu0 %v257
      %v297 = vpop.f32.mrf.mxu0
      %v298 = vadd.f32 %v233, %v297
      %299 = vmatmul.f32.gmra.mxu0 %v260
      %v300 = vpop.f32.mrf.mxu0
      %v301 = vadd.f32 %v236, %v300
      %302 = vmatmul.f32.gmra.mxu0 %v263
      %v303 = vpop.f32.mrf.mxu0
      %v304 = vadd.f32 %v239, %v303
      %305 = vmatmul.f32.gmra.mxu0 %v266
      %v306 = vpop.f32.mrf.mxu0
      %v307 = vadd.f32 %v242, %v306
      %308 = vmatmul.f32.gmra.mxu0 %v269
      %v309 = vpop.f32.mrf.mxu0
      %v310 = vadd.f32 %v245, %v309
      %311 = vmatmul.f32.gmra.mxu0 %v272
      %v312 = vpop.f32.mrf.mxu0
      %v313 = vadd.f32 %v248, %v312
      %314 = vmatmul.f32.gmra.mxu0 %v275
      %v315 = vpop.f32.mrf.mxu0
      %v316 = vadd.f32 %v251, %v315
      %317 = vmatmul.f32.gmra.mxu0 %v278
      %v318 = vpop.f32.mrf.mxu0
      %v319 = vadd.f32 %v254, %v318
      %320 = vdwg.mxu0
      %s321 = scalar_lea.vmem %s165, 16
      %v322 = vld [vmem:[%s321] sm:$0xff]
      %v323 = vld [vmem:[%s321 + $0x20] sm:$0xff]
      %v324 = vld [vmem:[%s321 + $0x40] sm:$0xff]
      %v325 = vld [vmem:[%s321 + $0x60] sm:$0xff]
      %v326 = vld [vmem:[%s321 + $0x80] sm:$0xff]
      %v327 = vld [vmem:[%s321 + $0xa0] sm:$0xff]
      %v328 = vld [vmem:[%s321 + $0xc0] sm:$0xff]
      %v329 = vld [vmem:[%s321 + $0xe0] sm:$0xff]
      %s330 = scalar_lea.vmem %s1, 16
      %v331 = vld [vmem:[%s330] sm:$0xff]
      %v333 = vsel %vm190, %v322, 0
      %v336 = vsel %vm190, %v323, 0
      %v339 = vsel %vm190, %v324, 0
      %v342 = vsel %vm190, %v325, 0
      %v345 = vsel %vm190, %v326, 0
      %v348 = vsel %vm190, %v327, 0
      %v351 = vsel %vm190, %v328, 0
      %v354 = vsel %vm190, %v329, 0
      %356 = vmatpush.msra.mxu0 0.0
      %357 = vmatpush.msra.mxu0 0.0
      %358 = vmatpush.msra.mxu0 0.0
      %359 = vmatpush.msra.mxu0 0.0
      %360 = vmatpush.msra.mxu0 0.0
      %361 = vmatpush.msra.mxu0 0.0
      %362 = vmatpush.msra.mxu0 0.0
      %363 = vmatpush.msra.mxu0 0.0
      %364 = vmatpush.msra.mxu0 0.0
      %365 = vmatpush.msra.mxu0 0.0
      %366 = vmatpush.msra.mxu0 0.0
      %367 = vmatpush.msra.mxu0 0.0
      %368 = vmatpush.msra.mxu0 0.0
      %369 = vmatpush.msra.mxu0 0.0
      %370 = vmatpush.msra.mxu0 0.0
      %371 = vmatpush.msra.mxu0 %v331
      %372 = vmatmul.f32.gmra.mxu0 %v333
      %v373 = vpop.f32.mrf.mxu0
      %v374 = vadd.f32 0.0, %v373
      %375 = vmatmul.f32.gmra.mxu0 %v336
      %v376 = vpop.f32.mrf.mxu0
      %v377 = vadd.f32 0.0, %v376
      %378 = vmatmul.f32.gmra.mxu0 %v339
      %v379 = vpop.f32.mrf.mxu0
      %v380 = vadd.f32 0.0, %v379
      %381 = vmatmul.f32.gmra.mxu0 %v342
      %v382 = vpop.f32.mrf.mxu0
      %v383 = vadd.f32 0.0, %v382
      %384 = vmatmul.f32.gmra.mxu0 %v345
      %v385 = vpop.f32.mrf.mxu0
      %v386 = vadd.f32 0.0, %v385
      %387 = vmatmul.f32.gmra.mxu0 %v348
      %v388 = vpop.f32.mrf.mxu0
      %v389 = vadd.f32 0.0, %v388
      %390 = vmatmul.f32.gmra.mxu0 %v351
      %v391 = vpop.f32.mrf.mxu0
      %v392 = vadd.f32 0.0, %v391
      %393 = vmatmul.f32.gmra.mxu0 %v354
      %v394 = vpop.f32.mrf.mxu0
      %v395 = vadd.f32 0.0, %v394
      %396 = vdwg.mxu0
      %v397 = vadd.f32 %v298, %v374
      %v398 = vadd.f32 %v301, %v377
      %v399 = vadd.f32 %v304, %v380
      %v400 = vadd.f32 %v307, %v383
      %v401 = vadd.f32 %v310, %v386
      %v402 = vadd.f32 %v313, %v389
      %v403 = vadd.f32 %v316, %v392
      %v404 = vadd.f32 %v319, %v395
      %v405 = vld [vmem:[%s321 + $0x1] sm:$0xff]
      %v406 = vld [vmem:[%s321 + $0x21] sm:$0xff]
      %v407 = vld [vmem:[%s321 + $0x41] sm:$0xff]
      %v408 = vld [vmem:[%s321 + $0x61] sm:$0xff]
      %v409 = vld [vmem:[%s321 + $0x81] sm:$0xff]
      %v410 = vld [vmem:[%s321 + $0xa1] sm:$0xff]
      %v411 = vld [vmem:[%s321 + $0xc1] sm:$0xff]
      %v412 = vld [vmem:[%s321 + $0xe1] sm:$0xff]
      %s413 = scalar_lea.vmem %s1, 24
      %v414 = vld [vmem:[%s413] sm:$0xff]
      %v416 = vsel %vm190, %v405, 0
      %v419 = vsel %vm190, %v406, 0
      %v422 = vsel %vm190, %v407, 0
      %v425 = vsel %vm190, %v408, 0
      %v428 = vsel %vm190, %v409, 0
      %v431 = vsel %vm190, %v410, 0
      %v434 = vsel %vm190, %v411, 0
      %v437 = vsel %vm190, %v412, 0
      %439 = vmatpush.msra.mxu0 0.0
      %440 = vmatpush.msra.mxu0 0.0
      %441 = vmatpush.msra.mxu0 0.0
      %442 = vmatpush.msra.mxu0 0.0
      %443 = vmatpush.msra.mxu0 0.0
      %444 = vmatpush.msra.mxu0 0.0
      %445 = vmatpush.msra.mxu0 0.0
      %446 = vmatpush.msra.mxu0 0.0
      %447 = vmatpush.msra.mxu0 0.0
      %448 = vmatpush.msra.mxu0 0.0
      %449 = vmatpush.msra.mxu0 0.0
      %450 = vmatpush.msra.mxu0 0.0
      %451 = vmatpush.msra.mxu0 0.0
      %452 = vmatpush.msra.mxu0 0.0
      %453 = vmatpush.msra.mxu0 0.0
      %454 = vmatpush.msra.mxu0 %v414
      %455 = vmatmul.f32.gmra.mxu0 %v416
      %v456 = vpop.f32.mrf.mxu0
      %v457 = vadd.f32 0.0, %v456
      %458 = vmatmul.f32.gmra.mxu0 %v419
      %v459 = vpop.f32.mrf.mxu0
      %v460 = vadd.f32 0.0, %v459
      %461 = vmatmul.f32.gmra.mxu0 %v422
      %v462 = vpop.f32.mrf.mxu0
      %v463 = vadd.f32 0.0, %v462
      %464 = vmatmul.f32.gmra.mxu0 %v425
      %v465 = vpop.f32.mrf.mxu0
      %v466 = vadd.f32 0.0, %v465
      %467 = vmatmul.f32.gmra.mxu0 %v428
      %v468 = vpop.f32.mrf.mxu0
      %v469 = vadd.f32 0.0, %v468
      %470 = vmatmul.f32.gmra.mxu0 %v431
      %v471 = vpop.f32.mrf.mxu0
      %v472 = vadd.f32 0.0, %v471
      %473 = vmatmul.f32.gmra.mxu0 %v434
      %v474 = vpop.f32.mrf.mxu0
      %v475 = vadd.f32 0.0, %v474
      %476 = vmatmul.f32.gmra.mxu0 %v437
      %v477 = vpop.f32.mrf.mxu0
      %v478 = vadd.f32 0.0, %v477
      %479 = vdwg.mxu0
      %v480 = vadd.f32 %v397, %v457
      %v481 = vadd.f32 %v398, %v460
      %v482 = vadd.f32 %v399, %v463
      %v483 = vadd.f32 %v400, %v466
      %v484 = vadd.f32 %v401, %v469
      %v485 = vadd.f32 %v402, %v472
      %v486 = vadd.f32 %v403, %v475
      %v487 = vadd.f32 %v404, %v478
      %s488 = scalar_lea.vmem %s165, 32
      %v489 = vld [vmem:[%s488] sm:$0xff]
      %v490 = vld [vmem:[%s488 + $0x20] sm:$0xff]
      %v491 = vld [vmem:[%s488 + $0x40] sm:$0xff]
      %v492 = vld [vmem:[%s488 + $0x60] sm:$0xff]
      %v493 = vld [vmem:[%s488 + $0x80] sm:$0xff]
      %v494 = vld [vmem:[%s488 + $0xa0] sm:$0xff]
      %v495 = vld [vmem:[%s488 + $0xc0] sm:$0xff]
      %v496 = vld [vmem:[%s488 + $0xe0] sm:$0xff]
      %s497 = scalar_lea.vmem %s1, 32
      %v498 = vld [vmem:[%s497] sm:$0xff]
      %v500 = vsel %vm190, %v489, 0
      %v503 = vsel %vm190, %v490, 0
      %v506 = vsel %vm190, %v491, 0
      %v509 = vsel %vm190, %v492, 0
      %v512 = vsel %vm190, %v493, 0
      %v515 = vsel %vm190, %v494, 0
      %v518 = vsel %vm190, %v495, 0
      %v521 = vsel %vm190, %v496, 0
      %523 = vmatpush.msra.mxu0 0.0
      %524 = vmatpush.msra.mxu0 0.0
      %525 = vmatpush.msra.mxu0 0.0
      %526 = vmatpush.msra.mxu0 0.0
      %527 = vmatpush.msra.mxu0 0.0
      %528 = vmatpush.msra.mxu0 0.0
      %529 = vmatpush.msra.mxu0 0.0
      %530 = vmatpush.msra.mxu0 0.0
      %531 = vmatpush.msra.mxu0 0.0
      %532 = vmatpush.msra.mxu0 0.0
      %533 = vmatpush.msra.mxu0 0.0
      %534 = vmatpush.msra.mxu0 0.0
      %535 = vmatpush.msra.mxu0 0.0
      %536 = vmatpush.msra.mxu0 0.0
      %537 = vmatpush.msra.mxu0 0.0
      %538 = vmatpush.msra.mxu0 %v498
      %539 = vmatmul.f32.gmra.mxu0 %v500
      %v540 = vpop.f32.mrf.mxu0
      %v541 = vadd.f32 0.0, %v540
      %542 = vmatmul.f32.gmra.mxu0 %v503
      %v543 = vpop.f32.mrf.mxu0
      %v544 = vadd.f32 0.0, %v543
      %545 = vmatmul.f32.gmra.mxu0 %v506
      %v546 = vpop.f32.mrf.mxu0
      %v547 = vadd.f32 0.0, %v546
      %548 = vmatmul.f32.gmra.mxu0 %v509
      %v549 = vpop.f32.mrf.mxu0
      %v550 = vadd.f32 0.0, %v549
      %551 = vmatmul.f32.gmra.mxu0 %v512
      %v552 = vpop.f32.mrf.mxu0
      %v553 = vadd.f32 0.0, %v552
      %554 = vmatmul.f32.gmra.mxu0 %v515
      %v555 = vpop.f32.mrf.mxu0
      %v556 = vadd.f32 0.0, %v555
      %557 = vmatmul.f32.gmra.mxu0 %v518
      %v558 = vpop.f32.mrf.mxu0
      %v559 = vadd.f32 0.0, %v558
      %560 = vmatmul.f32.gmra.mxu0 %v521
      %v561 = vpop.f32.mrf.mxu0
      %v562 = vadd.f32 0.0, %v561
      %563 = vdwg.mxu0
      %v564 = vadd.f32 %v480, %v541
      %v565 = vadd.f32 %v481, %v544
      %v566 = vadd.f32 %v482, %v547
      %v567 = vadd.f32 %v483, %v550
      %v568 = vadd.f32 %v484, %v553
      %v569 = vadd.f32 %v485, %v556
      %v570 = vadd.f32 %v486, %v559
      %v571 = vadd.f32 %v487, %v562
      %v572 = vld [vmem:[%s488 + $0x1] sm:$0xff]
      %v573 = vld [vmem:[%s488 + $0x21] sm:$0xff]
      %v574 = vld [vmem:[%s488 + $0x41] sm:$0xff]
      %v575 = vld [vmem:[%s488 + $0x61] sm:$0xff]
      %v576 = vld [vmem:[%s488 + $0x81] sm:$0xff]
      %v577 = vld [vmem:[%s488 + $0xa1] sm:$0xff]
      %v578 = vld [vmem:[%s488 + $0xc1] sm:$0xff]
      %v579 = vld [vmem:[%s488 + $0xe1] sm:$0xff]
      %s580 = scalar_lea.vmem %s1, 40
      %v581 = vld [vmem:[%s580] sm:$0xff]
      %v583 = vsel %vm190, %v572, 0
      %v586 = vsel %vm190, %v573, 0
      %v589 = vsel %vm190, %v574, 0
      %v592 = vsel %vm190, %v575, 0
      %v595 = vsel %vm190, %v576, 0
      %v598 = vsel %vm190, %v577, 0
      %v601 = vsel %vm190, %v578, 0
      %v604 = vsel %vm190, %v579, 0
      %606 = vmatpush.msra.mxu0 0.0
      %607 = vmatpush.msra.mxu0 0.0
      %608 = vmatpush.msra.mxu0 0.0
      %609 = vmatpush.msra.mxu0 0.0
      %610 = vmatpush.msra.mxu0 0.0
      %611 = vmatpush.msra.mxu0 0.0
      %612 = vmatpush.msra.mxu0 0.0
      %613 = vmatpush.msra.mxu0 0.0
      %614 = vmatpush.msra.mxu0 0.0
      %615 = vmatpush.msra.mxu0 0.0
      %616 = vmatpush.msra.mxu0 0.0
      %617 = vmatpush.msra.mxu0 0.0
      %618 = vmatpush.msra.mxu0 0.0
      %619 = vmatpush.msra.mxu0 0.0
      %620 = vmatpush.msra.mxu0 0.0
      %621 = vmatpush.msra.mxu0 %v581
      %622 = vmatmul.f32.gmra.mxu0 %v583
      %v623 = vpop.f32.mrf.mxu0
      %v624 = vadd.f32 0.0, %v623
      %625 = vmatmul.f32.gmra.mxu0 %v586
      %v626 = vpop.f32.mrf.mxu0
      %v627 = vadd.f32 0.0, %v626
      %628 = vmatmul.f32.gmra.mxu0 %v589
      %v629 = vpop.f32.mrf.mxu0
      %v630 = vadd.f32 0.0, %v629
      %631 = vmatmul.f32.gmra.mxu0 %v592
      %v632 = vpop.f32.mrf.mxu0
      %v633 = vadd.f32 0.0, %v632
      %634 = vmatmul.f32.gmra.mxu0 %v595
      %v635 = vpop.f32.mrf.mxu0
      %v636 = vadd.f32 0.0, %v635
      %637 = vmatmul.f32.gmra.mxu0 %v598
      %v638 = vpop.f32.mrf.mxu0
      %v639 = vadd.f32 0.0, %v638
      %640 = vmatmul.f32.gmra.mxu0 %v601
      %v641 = vpop.f32.mrf.mxu0
      %v642 = vadd.f32 0.0, %v641
      %643 = vmatmul.f32.gmra.mxu0 %v604
      %v644 = vpop.f32.mrf.mxu0
      %v645 = vadd.f32 0.0, %v644
      %646 = vdwg.mxu0
      %v647 = vadd.f32 %v564, %v624
      %v648 = vadd.f32 %v565, %v627
      %v649 = vadd.f32 %v566, %v630
      %v650 = vadd.f32 %v567, %v633
      %v651 = vadd.f32 %v568, %v636
      %v652 = vadd.f32 %v569, %v639
      %v653 = vadd.f32 %v570, %v642
      %v654 = vadd.f32 %v571, %v645
      %v655 = vld [vmem:[%s2] sm:$0x1]
      %v657 = vperm.slane %v655, 0
      %v659 = vadd.f32 %v647, %v657
      %v660 = vadd.f32 %v648, %v657
      %v661 = vadd.f32 %v649, %v657
      %v662 = vadd.f32 %v650, %v657
      %v663 = vadd.f32 %v651, %v657
      %v664 = vadd.f32 %v652, %v657
      %v665 = vadd.f32 %v653, %v657
      %v666 = vadd.f32 %v654, %v657
      %667 = vst.msk [vmem:[%s170] sm:$0xff] %vm190, %v659
      %668 = vst.msk [vmem:[%s170 + $0x8] sm:$0xff] %vm190, %v660
      %669 = vst.msk [vmem:[%s170 + $0x10] sm:$0xff] %vm190, %v661
      %670 = vst.msk [vmem:[%s170 + $0x18] sm:$0xff] %vm190, %v662
      %671 = vst.msk [vmem:[%s170 + $0x20] sm:$0xff] %vm190, %v663
      %672 = vst.msk [vmem:[%s170 + $0x28] sm:$0xff] %vm190, %v664
      %673 = vst.msk [vmem:[%s170 + $0x30] sm:$0xff] %vm190, %v665
      %674 = vst.msk [vmem:[%s170 + $0x38] sm:$0xff] %vm190, %v666
      %p675 = scmp.lt.s32.totalorder %s14, 1
      %s676 = scalar_select %p675, %s14, 1
      %s677 = smul.addr %s676, 8
      %s678 = smul.addr %s677, 8
      %s679 = scalar_lea.vmem %s3, %s678
      // Predicated region
      $region33: #{tpu_custom_call.1} parent=31 // pred_check
        %p680 = pneg %p100
      $region34: #{tpu_custom_call.1} parent=31 // pred_check_branch
        %682 = sbr.rel (%p680) target = $region36
      $region35: #{tpu_custom_call.1} parent=31 // pred_region
        _
      $region36: #{tpu_custom_call.1} parent=31 // pred_fallthru
        _
    $region32: #{tpu_custom_call.1} parent=5 // pred_fallthru
      _
    %p683 = scmp.le.s32.totalorder 2, %s9
    // Predicated region
    $region37: #{tpu_custom_call.1} parent=5 // pred_check
      %p684 = pneg %p683
    $region38: #{tpu_custom_call.1} parent=5 // pred_check_branch
      %686 = sbr.rel (%p684) target = $region40
    $region39: #{tpu_custom_call.1} parent=5 // pred_region
      %s687 = ssub.s32 %s9, 2
      // Predicated region
      $region41: #{tpu_custom_call.1} parent=39 // pred_check
        %p688 = pneg %p106
      $region42: #{tpu_custom_call.1} parent=39 // pred_check_branch
        %690 = sbr.rel (%p688) target = $region44
      $region43: #{tpu_custom_call.1} parent=39 // pred_region
        %p691 = scmp.lt.s32.totalorder %s15, 1
        %s692 = scalar_select %p691, %s15, 1
        %s693 = smul.addr %s692, 8
        %s694 = smul.addr %s693, 8
        %s695 = scalar_lea.vmem %s3, %s694
      $region44: #{tpu_custom_call.1} parent=39 // pred_fallthru
        _
    $region40: #{tpu_custom_call.1} parent=5 // pred_fallthru
      _
  $region6: #{tpu_custom_call.1} parent=0 // loop_footer
    %s13 = sadd.s32 1, %s9
  $region7: #{tpu_custom_call.1} parent=0 // loop_footer_branch
    %8 = sbr.rel target = $region3
  $region8: #{tpu_custom_call.1} parent=0 // loop_exit
    _

</llo_original>
